<compile_context>
chip_gen: v5e
topology: v5e:2x2
jax: 0.10.0
libtpu: 0.0.40
codegen_flags: <defaults>
</compile_context>

<pallas_src>
import jax
import jax.numpy as jnp
from jax.experimental import pallas as pl
from jax.experimental.pallas import tpu as pltpu

_LANE = 128
_SUBLANE = 8
_TARGET_BLOCK_BYTES = 4 * 1024 * 1024      # ~4 MiB block -> ~16 MiB pipelined
_VMEM_LIMIT_BYTES = 32 * 1024 * 1024       # fits v5e / v6e / v7x


def _h_sigmoid_kernel(x_ref, o_ref):
    # Pure VPU path: one add, two clamps, one multiply per element.
    # No EUP/XLU work, so the kernel is HBM-bandwidth-bound everywhere.
    x = x_ref[...]
    y = jnp.minimum(jnp.maximum(x + 3.0, 0.0), 6.0) * (1.0 / 6.0)
    o_ref[...] = y.astype(o_ref.dtype)


def _round_up(v, m):
    return ((v + m - 1) // m) * m


def _round_down(v, m):
    return (v // m) * m


def _largest_dividing_cols(total, max_cols):
    """Largest multiple of 128 that divides `total`, capped at max_cols (0 if none)."""
    best = 0
    c = _LANE
    limit = min(max_cols, total)
    while c <= limit:
        if total % c == 0:
            best = c
        c += _LANE
    return best


def h_sigmoid(x, *, wide_cols=1024):
    """Elementwise h_sigmoid: relu6(x + 3) / 6. Accepts any input shape."""
    orig_shape = x.shape
    total = int(x.size)
    itemsize = jnp.dtype(x.dtype).itemsize

    # Sub-32-bit dtypes pack along sublanes: 8 (f32) / 16 (bf16) / 32 (int8).
    sublane_mult = _SUBLANE * max(1, 4 // itemsize)

    # Lane-dense layout: prefer a wide last dim that exactly divides x.size so
    # no wrapper-side pad / post-slice (each is a full extra HBM pass) is
    # needed.  Fall back to minimal padding only when total % 128 != 0.
    cols = _largest_dividing_cols(total, wide_cols)
    needs_pad = cols == 0
    if needs_pad:
        cols = min(wide_cols, _round_up(total, _LANE))
    rows = pl.cdiv(total, cols)

    flat = x.reshape(-1)
    if needs_pad:
        flat = jnp.pad(flat, (0, rows * cols - total))
    x2d = flat.reshape(rows, cols)

    # Row tile: ~4 MiB per block, dtype-aware sublane multiple; the ragged
    # last block (if any) is masked by the grid, so no row padding.  Keep
    # >= 2 grid steps for mid-size inputs so both v7x TensorCores get work.
    t_rows_target = max(sublane_mult, _TARGET_BLOCK_BYTES // (cols * itemsize))
    if rows <= sublane_mult:
        t_rows = rows                      # full-extent block: always legal
    else:
        t_rows = max(sublane_mult,
                     _round_down(min(t_rows_target, rows), sublane_mult))
        if rows >= 2 * sublane_mult:
            half = _round_up(pl.cdiv(rows, 2), sublane_mult)
            t_rows = min(t_rows, half)

    grid = (pl.cdiv(rows, t_rows),)

    out2d = pl.pallas_call(
        _h_sigmoid_kernel,
        out_shape=jax.ShapeDtypeStruct((rows, cols), x.dtype),
        grid_spec=pltpu.PrefetchScalarGridSpec(
            num_scalar_prefetch=0,
            grid=grid,
            in_specs=[pl.BlockSpec((t_rows, cols), lambda i: (i, 0))],
            out_specs=pl.BlockSpec((t_rows, cols), lambda i: (i, 0)),
        ),
        compiler_params=pltpu.CompilerParams(
            # Rows are fully independent -> shard across both TensorCores on
            # v7x; harmless no-op on v5e/v6e.
            dimension_semantics=("parallel",),
            vmem_limit_bytes=_VMEM_LIMIT_BYTES,
        ),
        cost_estimate=pl.CostEstimate(
            flops=4 * total,
            transcendentals=0,
            bytes_accessed=2 * total * itemsize,
        ),
    )(x2d)

    if needs_pad:
        return out2d.reshape(-1)[:total].reshape(orig_shape)
    return out2d.reshape(orig_shape)


if __name__ == "__main__":
    key = jax.random.PRNGKey(0)
    # Small NCHW-style input; scaled so values fall on both sides of the
    # ReLU6 clamp region (-3 .. +3).
    x = jax.random.normal(key, (2, 4, 16, 16), dtype=jnp.float32) * 4.0

    out = h_sigmoid(x)
    out = jax.block_until_ready(out)

    # Reference in plain JAX: relu6(x + 3) / 6.
    ref = jnp.clip(x + 3.0, 0.0, 6.0) / 6.0
    assert out.shape == x.shape
    assert jnp.allclose(out, ref, atol=1e-6, rtol=1e-6)

    print("KERNEL_OK")
</pallas_src>

<mosaic_0001>
module attributes {stable_mosaic.version = 11 : i64} {
  func.func @_h_sigmoid_kernel(%arg0: i32, %arg1: memref<2x1024xf32, #tpu.memory_space<vmem>>, %arg2: memref<2x1024xf32, #tpu.memory_space<vmem>>) attributes {dimension_semantics = [#tpu.dimension_semantics<parallel>], iteration_bounds = array<i64: 1>, scalar_prefetch = 0 : i64, scratch_operands = 0 : i64, tpu.core_type = #tpu.core_type<tc>, window_params = [{transform_indices = @transform_0, window_bounds = array<i64: 2, 1024>}, {transform_indices = @transform_1, window_bounds = array<i64: 2, 1024>}]} {
    %c0 = arith.constant 0 : index
    %c0_0 = arith.constant 0 : index
    %0 = vector.load %arg1[%c0, %c0_0] : memref<2x1024xf32, #tpu.memory_space<vmem>>, vector<2x1024xf32>
    %cst = arith.constant 3.000000e+00 : f32
    %1 = vector.broadcast %cst : f32 to vector<2x1024xf32>
    %2 = arith.addf %0, %1 : vector<2x1024xf32>
    %cst_1 = arith.constant 0.000000e+00 : f32
    %3 = vector.broadcast %cst_1 : f32 to vector<2x1024xf32>
    %4 = arith.maximumf %2, %3 : vector<2x1024xf32>
    %cst_2 = arith.constant 6.000000e+00 : f32
    %5 = vector.broadcast %cst_2 : f32 to vector<2x1024xf32>
    %6 = arith.minimumf %4, %5 : vector<2x1024xf32>
    %cst_3 = arith.constant 0.166666672 : f32
    %7 = vector.broadcast %cst_3 : f32 to vector<2x1024xf32>
    %8 = arith.mulf %6, %7 : vector<2x1024xf32>
    %c0_4 = arith.constant 0 : index
    %c0_5 = arith.constant 0 : index
    %9 = vector.load %arg2[%c0_4, %c0_5] : memref<2x1024xf32, #tpu.memory_space<vmem>>, vector<2x1024xf32>
    tpu.vector_store %arg2[%c0_4, %c0_5], %8 {strides = array<i32>} : memref<2x1024xf32, #tpu.memory_space<vmem>>, vector<2x1024xf32>,
    return
  }
  func.func @transform_0(%arg0: i32) -> (i32, i32) {
    %c0_i32 = arith.constant 0 : i32
    %c0_i32_0 = arith.constant 0 : i32
    return %arg0, %c0_i32 : i32, i32
  }
  func.func @transform_1(%arg0: i32) -> (i32, i32) {
    %c0_i32 = arith.constant 0 : i32
    %c0_i32_0 = arith.constant 0 : i32
    return %arg0, %c0_i32 : i32, i32
  }
}

</mosaic_0001>

<llo_original>
// kernel: tpu_custom_call.1
$region0: #{tpu_custom_call.1}
  #allocation0 [shape = 'u32[]', space=smem, size = 0x4, offset = 0x4, fixed_abs, tag = 'smem constant byte address 0x4 - core index']
  #allocation1 [shape = 'u32[72,128]{1,0:T(1,128)}', space=vmem, size = 0x9000, scoped, tag = 'internal scratch']
  %s0 = inlined_call_operand.hbm [shape: f32[2,1024], index: 0, kind: input, shape index: {}]
  %s1 = inlined_call_operand.hbm [shape: f32[2,1024], index: 1, kind: output, shape index: {}]
  %s2 = sld [smem:[#allocation0]]
  $region18: #{tpu_custom_call.1} parent=0
    _
  %s4 = ssub.s32 1, %s2
  %s5 = scalar_select 0, %s4, %s2
  $region1: #{tpu_custom_call.1} parent=0
    #allocation2 [shape = 'u8[8192]{0}', space=vmem, size = 0x2000, scoped, tag = 'input window, operand 0, single buffered']
    #allocation3 [shape = 's32[1]{0}', space=sflag, size = 0x4, scoped, tag = 'scoped memory for tpu_custom_call.1']
    #allocation4 [shape = 's32[1]{0}', space=sflag, size = 0x4, scoped, tag = 'scoped memory for tpu_custom_call.1']
    #allocation5 [shape = 'u8[8192]{0}', space=vmem, size = 0x2000, scoped, tag = 'output window, operand 0, single buffered']
    %6 = vsyncpa [#allocation3], 0
    %7 = vsyncpa [#allocation4], 0
    // Predicated region
    $region2: #{tpu_custom_call.1} parent=1 // pred_check
      _
    $region3: #{tpu_custom_call.1} parent=1 // pred_check_branch
      %9 = sbr.rel (0) target = $region5
    $region4: #{tpu_custom_call.1} parent=1 // pred_region
      %11 = vsyncadd [#allocation3], 0
      %s13 = sshll.u32 %s0, 4
      %s14 = int_to_ptr.hbm [resolvable:$true] %s13
      %s15 = sshll.u32 [#allocation2], 4
      %s16 = int_to_ptr.vmem [resolvable:$true] %s15
      %18 = dma.hbm_to_vmem [thread:$0]  %s14, 256, %s16, [#allocation3]
    $region5: #{tpu_custom_call.1} parent=1 // pred_fallthru
      _
    // Predicated region
    $region6: #{tpu_custom_call.1} parent=1 // pred_check
      _
    $region7: #{tpu_custom_call.1} parent=1 // pred_check_branch
      %20 = sbr.rel (0) target = $region9
    $region8: #{tpu_custom_call.1} parent=1 // pred_region
      %22 = dma.done [#allocation3], 256
    $region9: #{tpu_custom_call.1} parent=1 // pred_fallthru
      _
    %v23 = vld [vmem:[#allocation2] sm:$0xff]
    %v24 = vld [vmem:[#allocation2 + $0x8] sm:$0xff]
    %v25 = vadd.f32 %v23, 3.0
    %v26 = vadd.f32 %v24, 3.0
    %v27 = vmax.f32 %v25, 0.0
    %v28 = vmax.f32 %v26, 0.0
    %v29 = vmin.f32 %v27, 6.0
    %v30 = vmin.f32 %v28, 6.0
    %v31 = vmul.f32 %v29, 0.16666667
    %v32 = vmul.f32 %v30, 0.16666667
    %33 = vst [vmem:[#allocation5] sm:$0xff] %v31
    %34 = vst [vmem:[#allocation5 + $0x8] sm:$0xff] %v32
    // Predicated region
    $region10: #{tpu_custom_call.1} parent=1 // pred_check
      _
    $region11: #{tpu_custom_call.1} parent=1 // pred_check_branch
      %36 = sbr.rel (0) target = $region13
    $region12: #{tpu_custom_call.1} parent=1 // pred_region
      %38 = vsyncadd [#allocation4], 0
      %s40 = sshll.u32 [#allocation5], 4
      %s41 = int_to_ptr.vmem [resolvable:$true] %s40
      %s42 = sshll.u32 %s1, 4
      %s43 = int_to_ptr.hbm [resolvable:$true] %s42
      %45 = dma.vmem_to_hbm [thread:$0]  %s41, 256, %s43, [#allocation4]
    $region13: #{tpu_custom_call.1} parent=1 // pred_fallthru
      _
    // Predicated region
    $region14: #{tpu_custom_call.1} parent=1 // pred_check
      _
    $region15: #{tpu_custom_call.1} parent=1 // pred_check_branch
      %47 = sbr.rel (0) target = $region17
    $region16: #{tpu_custom_call.1} parent=1 // pred_region
      %49 = dma.done [#allocation4], 256
    $region17: #{tpu_custom_call.1} parent=1 // pred_fallthru
      _
    %50 = vsyncpa [#allocation3], 1
    %51 = vsyncpa [#allocation4], 1

</llo_original>
